<compile_context>
chip_gen: v7x
topology: tpu7x:2x2x1
jax: 0.10.0
libtpu: 0.0.40
codegen_flags: <defaults>
</compile_context>

<pallas_src>
import functools

import jax
import jax.numpy as jnp
from jax.experimental import pallas as pl
from jax.experimental.pallas import tpu as pltpu


def _round_up(n, m):
    return ((n + m - 1) // m) * m


def _fast_recip(x):
    """EUP-seeded reciprocal (approx) + one Newton step: no VPU divide, ~f32 exact."""
    r = pl.reciprocal(x, approx=True)
    return r * (2.0 - x * r)


def _fast_rsqrt(x):
    """rsqrt (EUP) + one Newton step -> ~f32-exact inverse square root."""
    r = jax.lax.rsqrt(x)
    return r * (1.5 - 0.5 * x * r * r)


def _proto_kernel(x_ref, ct_ref, caux_ref, p_ref, *, distance: str, k_out: int, masked: bool):
    """One batch tile.

    x_ref    : (TB, D)   input features (native dtype -> MXU operand)
    ct_ref   : (D,  Kp)  centroids, pre-transposed in the wrapper (resident block)
    caux_ref : (2,  Kp)  hoisted cluster terms:
                 row0 = ||c||^2 (l2, +inf on padded cols)  or  1/max(||c||,eps) (cosine, 0 on pads)
                 row1 = additive bias: 0 real / -inf padded (used by the cosine path)
    p_ref    : (TB, k_out) output soft-assignment probabilities
    """
    x = x_ref[...]
    # Single MXU matmul replaces the (TB, K, D) broadcasted diff/square/reduce.
    num = jnp.dot(x, ct_ref[...], preferred_element_type=jnp.float32)  # (TB, Kp) f32
    caux = caux_ref[...].astype(jnp.float32)                           # (2,  Kp)

    if distance == "l2":
        # -||x - c||^2 = 2*x.c - ||c||^2 - ||x||^2 ; the per-row ||x||^2 is a
        # softmax-invariant constant and is dropped (exact after softmax).
        # Padded cluster columns carry ||c||^2 = +inf -> logit = -inf (mask for free).
        d = 2.0 * num - caux[0:1, :]
    elif distance == "cosine":
        xf = x.astype(jnp.float32)
        xn2 = jnp.sum(xf * xf, axis=1, keepdims=True)                  # (TB, 1)
        # 1/max(||x||, 1e-8).  NOTE: clamp is per-factor here (torch clamps the
        # product); only differs for near-zero vectors.
        row_inv = _fast_rsqrt(jnp.maximum(xn2, 1e-16))
        d = (num * row_inv) * caux[0:1, :]                             # rank-1 column scale
        if masked:
            d = d + caux[1:2, :]                                       # 0 real / -inf padded cols
    else:
        raise ValueError(f"unknown distance: {distance}")

    # softmax over the cluster axis
    m = jnp.max(d, axis=1, keepdims=True)
    e = jnp.exp(d - m)
    p = e * _fast_recip(jnp.sum(e, axis=1, keepdims=True))
    if k_out != p.shape[-1]:
        p = p[:, :k_out]                 # store only the real clusters (masked lane store)
    p_ref[...] = p.astype(p_ref.dtype)


def _vmem_limit_bytes():
    """~3/4 of the chip's physical VMEM (capped at 96 MiB): ~96 MiB on v5e/v6e, ~48 MiB on v7x."""
    cap = 64 * 1024 * 1024  # conservative fallback = v7x per-core VMEM
    try:
        info = pltpu.get_tpu_info()
        cap = int(getattr(info, "vmem_capacity_bytes", cap))
    except Exception:
        pass
    return int(min(96 * 1024 * 1024, (cap * 3) // 4))


def _auto_block_b(B, D, Kp, K_out, x_bytes, c_bytes, budget, row_mult):
    """Largest batch tile whose double-buffered tiles + f32 temps fit the VMEM budget,
    while keeping enough grid steps for DMA pipelining / megacore sharding."""
    Dv = _round_up(D, 128)            # VMEM lane padding of the minor dims
    Kov = _round_up(K_out, 128)
    # resident centroids^T + (2,Kp) aux (double-buffered by the pipeliner)
    fixed = 2 * Dv * Kp * c_bytes + 2 * 8 * Kp * 4
    # per batch row: x tile + out tile (double-buffered) + f32 temps (logits/exp/etc.)
    per_row = 2 * Dv * x_bytes + 2 * Kov * 4 + 5 * Kp * 4 + Dv * 4
    bb = 1024                          # 512-1024-row tiles hit ~85% of HBM roofline
    while bb > row_mult and fixed + bb * per_row > budget:
        bb //= 2
    # Prefer >= 8 grid steps (>= 4 per core under v7x megacore; pipelined on v5e/v6e)
    # as long as each step keeps >= 256 rows.
    per_step = _round_up(pl.cdiv(B, 8), row_mult)
    if per_step >= 256:
        bb = min(bb, per_step)
    bb = min(bb, _round_up(B, row_mult))
    return max(row_mult, _round_up(bb, row_mult))


def prototypical_layer(x, clusters, *, distance="l2", block_b=None, out_dtype=jnp.float32):
    """JAX/Pallas equivalent of PrototypicalLayer.forward.

    x:        (B, zdim)
    clusters: (nClusters, zdim)
    returns:  (B, nClusters) soft assignments (softmax over clusters), dtype `out_dtype`.
    """
    if distance not in ("l2", "cosine"):
        raise ValueError(f"unknown distance: {distance}")
    B, D = x.shape
    K, D2 = clusters.shape
    assert D == D2, "zdim mismatch between x and clusters"

    # Cluster (lane) dim of the compute is padded to 128 for full MXU width; the
    # feature dim D is NOT padded (full-dim blocks are legal and keep DMAs lean).
    Kp = _round_up(K, 128)
    # Lane-dense HBM output only when K is within ~10% of a 128 multiple; otherwise
    # write just the K real columns (saves the dominant write-back traffic).
    K_out = Kp if (Kp - K) * 10 <= Kp else K

    x_bytes = jnp.dtype(x.dtype).itemsize
    c_bytes = jnp.dtype(clusters.dtype).itemsize
    out_bytes = jnp.dtype(out_dtype).itemsize
    row_mult = 8 * max(1, 4 // x_bytes)      # 8 f32 / 16 bf16 / 32 int8-fp8 sublane packing

    vmem_limit = _vmem_limit_bytes()
    if block_b is None:
        block_b = _auto_block_b(B, D, Kp, K_out, x_bytes, c_bytes,
                                budget=int(vmem_limit * 0.7), row_mult=row_mult)
    block_b = max(row_mult, _round_up(block_b, row_mult))
    Bp = _round_up(B, block_b)

    x_p = jnp.pad(x, ((0, Bp - B), (0, 0))) if Bp != B else x          # batch pad only
    c_p = jnp.pad(clusters, ((0, Kp - K), (0, 0))) if Kp != K else clusters

    # Transpose once here (not per tile); matmul operands keep the input dtype so
    # bf16 feeds the MXU directly with f32 accumulation.
    c_t = c_p.T                                                        # (D, Kp)

    # Hoisted cluster-only reductions, with the padded-column mask folded in.
    c_f32 = clusters.astype(jnp.float32)
    c_sq = jnp.sum(c_f32 * c_f32, axis=1)                              # (K,) ||c||^2
    npad = Kp - K
    if distance == "l2":
        main, pad_main, pad_bias = c_sq, jnp.inf, 0.0
    else:
        main = 1.0 / jnp.maximum(jnp.sqrt(c_sq), 1e-8)                 # 1/max(||c||, eps)
        pad_main, pad_bias = 0.0, -jnp.inf
    if npad:
        main = jnp.concatenate([main, jnp.full((npad,), pad_main, jnp.float32)])
        bias = jnp.concatenate([jnp.zeros((K,), jnp.float32),
                                jnp.full((npad,), pad_bias, jnp.float32)])
    else:
        bias = jnp.zeros((K,), jnp.float32)
    caux = jnp.stack([main.astype(jnp.float32), bias], axis=0)         # (2, Kp)

    kernel = functools.partial(_proto_kernel, distance=distance, k_out=K_out, masked=npad > 0)

    cost = pl.CostEstimate(
        flops=int(2 * Bp * D * Kp + 10 * Bp * Kp),
        transcendentals=int(Bp * Kp + 2 * Bp),
        bytes_accessed=int(Bp * D * x_bytes + D * Kp * c_bytes + 2 * Kp * 4
                           + Bp * K_out * out_bytes),
    )

    out = pl.pallas_call(
        kernel,
        out_shape=jax.ShapeDtypeStruct((Bp, K_out), out_dtype),
        grid_spec=pltpu.PrefetchScalarGridSpec(
            num_scalar_prefetch=0,
            grid=(Bp // block_b,),
            in_specs=[
                pl.BlockSpec((block_b, D), lambda i: (i, 0)),  # x batch tile (pipelined, D unpadded)
                pl.BlockSpec((D, Kp), lambda i: (0, 0)),       # centroids^T (resident, DMA'd once)
                pl.BlockSpec((2, Kp), lambda i: (0, 0)),       # hoisted cluster terms + pad mask
            ],
            out_specs=pl.BlockSpec((block_b, K_out), lambda i: (i, 0)),
        ),
        compiler_params=pltpu.CompilerParams(
            dimension_semantics=("parallel",),                 # shard batch tiles across TCs
            vmem_limit_bytes=vmem_limit,
        ),
        cost_estimate=cost,
    )(x_p, c_t, caux)

    return out[:B, :K]


if __name__ == "__main__":
    # Deterministic synthetic inputs (no checkpoint loading).
    B = 8          # batch
    zdim = 32      # feature dim
    nClusters = 4  # number of prototypes

    key = jax.random.PRNGKey(0)
    kx, kc = jax.random.split(key)
    # Snap inputs to the bf16 grid so the MXU result is precision-setting
    # independent and the f32 references below are exact comparisons.
    x = jax.random.normal(kx, (B, zdim), jnp.float32).astype(jnp.bfloat16).astype(jnp.float32)
    centroids_init = (
        jax.random.normal(kc, (nClusters, zdim), jnp.float32).astype(jnp.bfloat16).astype(jnp.float32)
    )

    # --- l2 distance (module default) ---
    p_l2 = prototypical_layer(x, centroids_init, distance="l2")
    jax.block_until_ready(p_l2)
    diff = x[:, None, :] - centroids_init[None, :, :]
    p_l2_ref = jax.nn.softmax(-jnp.sum(diff * diff, axis=2), axis=1)
    assert p_l2.shape == (B, nClusters)
    assert jnp.allclose(p_l2, p_l2_ref, atol=5e-4), "l2 mismatch"

    # --- cosine distance variant ---
    p_cos = prototypical_layer(x, centroids_init, distance="cosine")
    jax.block_until_ready(p_cos)
    num = jnp.einsum("bd,kd->bk", x, centroids_init, precision=jax.lax.Precision.HIGHEST)
    xn = jnp.linalg.norm(x, axis=1, keepdims=True)
    cn = jnp.linalg.norm(centroids_init, axis=1, keepdims=True).T
    p_cos_ref = jax.nn.softmax(num / jnp.maximum(xn * cn, 1e-8), axis=1)
    assert jnp.allclose(p_cos, p_cos_ref, atol=5e-4), "cosine mismatch"

    print("KERNEL_OK")
</pallas_src>

<mosaic_0001>
module attributes {stable_mosaic.version = 11 : i64} {
  func.func @_proto_kernel(%arg0: i32, %arg1: memref<8x32xf32, #tpu.memory_space<vmem>>, %arg2: memref<32x128xf32, #tpu.memory_space<vmem>>, %arg3: memref<2x128xf32, #tpu.memory_space<vmem>>, %arg4: memref<8x4xf32, #tpu.memory_space<vmem>>) attributes {dimension_semantics = [#tpu.dimension_semantics<parallel>], iteration_bounds = array<i64: 1>, scalar_prefetch = 0 : i64, scratch_operands = 0 : i64, tpu.core_type = #tpu.core_type<tc>, window_params = [{transform_indices = @transform_0, window_bounds = array<i64: 8, 32>}, {pipeline_mode = #tpu.pipeline_mode<synchronous>, transform_indices = @transform_1, window_bounds = array<i64: 32, 128>}, {pipeline_mode = #tpu.pipeline_mode<synchronous>, transform_indices = @transform_2, window_bounds = array<i64: 2, 128>}, {transform_indices = @transform_3, window_bounds = array<i64: 8, 4>}]} {
    %c0 = arith.constant 0 : index
    %c0_0 = arith.constant 0 : index
    %0 = vector.load %arg1[%c0, %c0_0] : memref<8x32xf32, #tpu.memory_space<vmem>>, vector<8x32xf32>
    %c0_1 = arith.constant 0 : index
    %c0_2 = arith.constant 0 : index
    %1 = vector.load %arg2[%c0_1, %c0_2] : memref<32x128xf32, #tpu.memory_space<vmem>>, vector<32x128xf32>
    %cst = arith.constant dense<0.000000e+00> : vector<8x128xf32>
    %2 = tpu.matmul %0, %1, %cst {dimension_numbers = #tpu.dot_dimension_numbers<[1], [0], [0], [1], [0, 0, 1, 1], [], []>} : vector<8x32xf32>, vector<32x128xf32>, vector<8x128xf32> -> vector<8x128xf32>
    %c0_3 = arith.constant 0 : index
    %c0_4 = arith.constant 0 : index
    %3 = vector.load %arg3[%c0_3, %c0_4] : memref<2x128xf32, #tpu.memory_space<vmem>>, vector<2x128xf32>
    %cst_5 = arith.constant 2.000000e+00 : f32
    %4 = vector.broadcast %cst_5 : f32 to vector<8x128xf32>
    %5 = arith.mulf %4, %2 : vector<8x128xf32>
    %6 = vector.extract_strided_slice %3 {offsets = [0, 0], sizes = [1, 128], strides = [1, 1]} : vector<2x128xf32> to vector<1x128xf32>
    %7 = vector.broadcast %6 : vector<1x128xf32> to vector<8x128xf32>
    %8 = arith.subf %5, %7 : vector<8x128xf32>
    %cst_6 = arith.constant dense<0xFF800000> : vector<8xf32>
    %9 = vector.multi_reduction <maximumf>, %8, %cst_6 [1] : vector<8x128xf32> to vector<8xf32>
    %10 = vector.shape_cast %9 : vector<8xf32> to vector<8x1xf32>
    %11 = vector.broadcast %10 : vector<8x1xf32> to vector<8x128xf32>
    %12 = arith.subf %8, %11 : vector<8x128xf32>
    %13 = math.exp %12 : vector<8x128xf32>
    %cst_7 = arith.constant dense<0.000000e+00> : vector<8xf32>
    %14 = vector.multi_reduction <add>, %13, %cst_7 [1] : vector<8x128xf32> to vector<8xf32>
    %15 = vector.shape_cast %14 : vector<8xf32> to vector<8x1xf32>
    %16 = tpu.reciprocal %15 {approx = true} : vector<8x1xf32> -> vector<8x1xf32>
    %17 = arith.mulf %15, %16 : vector<8x1xf32>
    %cst_8 = arith.constant 2.000000e+00 : f32
    %18 = vector.broadcast %cst_8 : f32 to vector<8x1xf32>
    %19 = arith.subf %18, %17 : vector<8x1xf32>
    %20 = arith.mulf %16, %19 : vector<8x1xf32>
    %21 = vector.broadcast %20 : vector<8x1xf32> to vector<8x128xf32>
    %22 = arith.mulf %13, %21 : vector<8x128xf32>
    %23 = vector.extract_strided_slice %22 {offsets = [0, 0], sizes = [8, 4], strides = [1, 1]} : vector<8x128xf32> to vector<8x4xf32>
    %c0_9 = arith.constant 0 : index
    %c0_10 = arith.constant 0 : index
    %24 = vector.load %arg4[%c0_9, %c0_10] : memref<8x4xf32, #tpu.memory_space<vmem>>, vector<8x4xf32>
    tpu.vector_store %arg4[%c0_9, %c0_10], %23 {strides = array<i32>} : memref<8x4xf32, #tpu.memory_space<vmem>>, vector<8x4xf32>,
    return
  }
  func.func @transform_0(%arg0: i32) -> (i32, i32) {
    %c0_i32 = arith.constant 0 : i32
    %c0_i32_0 = arith.constant 0 : i32
    return %arg0, %c0_i32 : i32, i32
  }
  func.func @transform_1(%arg0: i32) -> (i32, i32) {
    %c0_i32 = arith.constant 0 : i32
    %c0_i32_0 = arith.constant 0 : i32
    %c0_i32_1 = arith.constant 0 : i32
    return %c0_i32, %c0_i32_0 : i32, i32
  }
  func.func @transform_2(%arg0: i32) -> (i32, i32) {
    %c0_i32 = arith.constant 0 : i32
    %c0_i32_0 = arith.constant 0 : i32
    %c0_i32_1 = arith.constant 0 : i32
    return %c0_i32, %c0_i32_0 : i32, i32
  }
  func.func @transform_3(%arg0: i32) -> (i32, i32) {
    %c0_i32 = arith.constant 0 : i32
    %c0_i32_0 = arith.constant 0 : i32
    return %arg0, %c0_i32 : i32, i32
  }
}

</mosaic_0001>

<llo_original>
// kernel: tpu_custom_call.1
$region0: #{tpu_custom_call.1}
  #allocation0 [shape = 'u32[]', space=smem, size = 0x4, offset = 0x4, fixed_abs, tag = 'smem constant byte address 0x4 - core index']
  #allocation1 [shape = 'u32[144,128]{1,0:T(1,128)}', space=vmem, size = 0x12000, scoped, tag = 'internal scratch']
  %s0 = inlined_call_operand.hbm [shape: f32[8,32], index: 0, kind: input, shape index: {}]
  %s1 = inlined_call_operand.hbm [shape: f32[32,128], index: 1, kind: input, shape index: {}]
  %s2 = inlined_call_operand.vmem [shape: f32[2,128], index: 2, kind: input, shape index: {}]
  %s3 = inlined_call_operand.vmem [shape: f32[8,4], index: 3, kind: output, shape index: {}]
  %s4 = sld [smem:[#allocation0]]
  $region30: #{tpu_custom_call.1} parent=0
    _
  %s6 = ssub.s32 1, %s4
  %s7 = scalar_select 0, %s6, %s4
  $region1: #{tpu_custom_call.1} parent=0
    #allocation2 [shape = 'u8[4096]{0}', space=vmem, size = 0x1000, scoped, tag = 'input window, operand 0, single buffered']
    #allocation3 [shape = 's32[1]{0}', space=sflag, size = 0x4, scoped, tag = 'scoped memory for tpu_custom_call.1']
    #allocation4 [shape = 'u8[16384]{0}', space=vmem, size = 0x4000, scoped, tag = 'input window, operand 1, single buffered']
    #allocation5 [shape = 's32[1]{0}', space=sflag, size = 0x4, scoped, tag = 'scoped memory for tpu_custom_call.1']
    %8 = vsyncpa [#allocation3], 0
    %9 = vsyncpa [#allocation5], 0
    // Predicated region
    $region2: #{tpu_custom_call.1} parent=1 // pred_check
      _
    $region3: #{tpu_custom_call.1} parent=1 // pred_check_branch
      %11 = sbr.rel (0) target = $region5
    $region4: #{tpu_custom_call.1} parent=1 // pred_region
      %s13 = ssub.s32 128, 128
      %14 = vsyncadd [#allocation3], %s13
      %s16 = sshll.u32 [#allocation2], 4
      %s17 = int_to_ptr.vmem [resolvable:$true] %s16
      %19 = dma.hbm_to_vmem [thread:$0]  %s0, 128, %s17, [#allocation3]
    $region5: #{tpu_custom_call.1} parent=1 // pred_fallthru
      _
    // Predicated region
    $region6: #{tpu_custom_call.1} parent=1 // pred_check
      _
    $region7: #{tpu_custom_call.1} parent=1 // pred_check_branch
      %21 = sbr.rel (0) target = $region9
    $region8: #{tpu_custom_call.1} parent=1 // pred_region
      %s23 = ssub.s32 512, 512
      %24 = vsyncadd [#allocation5], %s23
      %s25 = sshll.u32 [#allocation4], 4
      %s26 = int_to_ptr.vmem [resolvable:$true] %s25
      %31 = dma.hbm_to_vmem [thread:$0]  %s1, 512, %s26, [#allocation5], 128, 128, 8
    $region9: #{tpu_custom_call.1} parent=1 // pred_fallthru
      _
    // Predicated region
    $region10: #{tpu_custom_call.1} parent=1 // pred_check
      _
    $region11: #{tpu_custom_call.1} parent=1 // pred_check_branch
      %33 = sbr.rel (0) target = $region13
    $region12: #{tpu_custom_call.1} parent=1 // pred_region
      _
    $region13: #{tpu_custom_call.1} parent=1 // pred_fallthru
      _
    // Predicated region
    $region14: #{tpu_custom_call.1} parent=1 // pred_check
      _
    $region15: #{tpu_custom_call.1} parent=1 // pred_check_branch
      %35 = sbr.rel (0) target = $region17
    $region16: #{tpu_custom_call.1} parent=1 // pred_region
      %36 = dma.done [#allocation3], 128
    $region17: #{tpu_custom_call.1} parent=1 // pred_fallthru
      _
    // Predicated region
    $region18: #{tpu_custom_call.1} parent=1 // pred_check
      _
    $region19: #{tpu_custom_call.1} parent=1 // pred_check_branch
      %38 = sbr.rel (0) target = $region21
    $region20: #{tpu_custom_call.1} parent=1 // pred_region
      %39 = dma.done [#allocation5], 512
    $region21: #{tpu_custom_call.1} parent=1 // pred_fallthru
      _
    %v40 = vld [vmem:[#allocation2] sm:$0xff]
    %v41 = vld [vmem:[#allocation4] sm:$0xff]
    %v42 = vld [vmem:[#allocation4 + $0x8] sm:$0xff]
    %v43 = vld [vmem:[#allocation4 + $0x10] sm:$0xff]
    %v44 = vld [vmem:[#allocation4 + $0x18] sm:$0xff]
    %vm45 = vcmask 261120
    %v47 = vsel %vm45, %v40, 0
    %49 = vmatprep.subr.mxu0 0.0
    %50 = vmatpush1.msra.mxu0 %v41
    %51 = vmatprep.subr.mxu0 0.0
    %52 = vmatpush1.msra.mxu0 %v42
    %53 = vmatprep.subr.mxu0 0.0
    %54 = vmatpush1.msra.mxu0 %v43
    %55 = vmatprep.subr.mxu0 0.0
    %56 = vmatpush1.msra.mxu0 %v44
    %57 = vmatprep.subr.mxu0 0.0
    %58 = vmatpush1.msra.mxu0 0.0
    %59 = vmatprep.subr.mxu0 0.0
    %60 = vmatpush1.msra.mxu0 0.0
    %61 = vmatprep.subr.mxu0 0.0
    %62 = vmatpush1.msra.mxu0 0.0
    %63 = vmatprep.subr.mxu0 0.0
    %64 = vmatpush1.msra.mxu0 0.0
    %65 = vmatprep.subr.mxu0 0.0
    %66 = vmatpush1.msra.mxu0 0.0
    %67 = vmatprep.subr.mxu0 0.0
    %68 = vmatpush1.msra.mxu0 0.0
    %69 = vmatprep.subr.mxu0 0.0
    %70 = vmatpush1.msra.mxu0 0.0
    %71 = vmatprep.subr.mxu0 0.0
    %72 = vmatpush1.msra.mxu0 0.0
    %73 = vmatprep.subr.mxu0 0.0
    %74 = vmatpush1.msra.mxu0 0.0
    %75 = vmatprep.subr.mxu0 0.0
    %76 = vmatpush1.msra.mxu0 0.0
    %77 = vmatprep.subr.mxu0 0.0
    %78 = vmatpush1.msra.mxu0 0.0
    %79 = vmatprep.subr.mxu0 0.0
    %80 = vmatpush1.msra.mxu0 0.0
    %81 = vmatprep.subr.mxu0 0.0
    %82 = vmatpush1.msra.mxu0 0.0
    %83 = vmatprep.subr.mxu0 0.0
    %84 = vmatpush1.msra.mxu0 0.0
    %85 = vmatprep.subr.mxu0 0.0
    %86 = vmatpush1.msra.mxu0 0.0
    %87 = vmatprep.subr.mxu0 0.0
    %88 = vmatpush1.msra.mxu0 0.0
    %89 = vmatprep.subr.mxu0 0.0
    %90 = vmatpush1.msra.mxu0 0.0
    %91 = vmatprep.subr.mxu0 0.0
    %92 = vmatpush1.msra.mxu0 0.0
    %93 = vmatprep.subr.mxu0 0.0
    %94 = vmatpush1.msra.mxu0 0.0
    %95 = vmatprep.subr.mxu0 0.0
    %96 = vmatpush1.msra.mxu0 0.0
    %97 = vmatprep.subr.mxu0 0.0
    %98 = vmatpush1.msra.mxu0 0.0
    %99 = vmatprep.subr.mxu0 0.0
    %100 = vmatpush1.msra.mxu0 0.0
    %101 = vmatprep.subr.mxu0 0.0
    %102 = vmatpush1.msra.mxu0 0.0
    %103 = vmatprep.subr.mxu0 0.0
    %104 = vmatpush1.msra.mxu0 0.0
    %105 = vmatprep.subr.mxu0 0.0
    %106 = vmatpush1.msra.mxu0 0.0
    %107 = vmatprep.subr.mxu0 0.0
    %108 = vmatpush1.msra.mxu0 0.0
    %109 = vmatprep.subr.mxu0 0.0
    %110 = vmatpush1.msra.mxu0 0.0
    %111 = vmatprep.subr.mxu0 0.0
    %112 = vmatpush1.msra.mxu0 0.0
    %113 = vmatprep.mubr.f32.mxu0 0.0
    %114 = vmatmul.mubr.f32.gmra.mrb[0].mxu0 %v47
    %v115 = vpop.f32.mrb[0].mxu0
    %v116 = vadd.f32 0.0, %v115
    %v117 = vpop.f32.mrb[0].mxu0
    %118 = vdwg.mxu0
    %v119 = vld [vmem:[%s2] sm:$0x3]
    %v120 = vmul.f32 %v116, 2.0
    %v121 = vlaneseq
    %v122 = vshrl.u32 %v121, 7
    %v123 = vsub.s32 0, %v122
    %v124 = vrot.slane %v119, %v123
    %v125 = vsub.f32 %v120, %v124
    %126 = vmax.xlane.f32.xlu0 %v125
    %v127 = vpop.xlane.xlu0 %126
    %v128 = vsub.f32 %v125, %v127
    %v129 = vmul.f32 %v128, 1.442695
    %v130 = vpow.pop %v129
    %131 = vadd.xlane.f32.xlu0 %v130
    %v132 = vpop.xlane.xlu0 %131
    %v133 = vrcp.pop %v132
    %v134 = vmul.f32 %v132, %v133
    %v135 = vsub.f32 2.0, %v134
    %v136 = vmul.f32 %v133, %v135
    %v137 = vmul.f32 %v130, %v136
    %vm138 = vcmask 31744
    %139 = vst.msk [vmem:[%s3] sm:$0xff] %vm138, %v137
    // Predicated region
    $region22: #{tpu_custom_call.1} parent=1 // pred_check
      _
    $region23: #{tpu_custom_call.1} parent=1 // pred_check_branch
      %141 = sbr.rel (0) target = $region25
    $region24: #{tpu_custom_call.1} parent=1 // pred_region
      _
    $region25: #{tpu_custom_call.1} parent=1 // pred_fallthru
      _
    // Predicated region
    $region26: #{tpu_custom_call.1} parent=1 // pred_check
      _
    $region27: #{tpu_custom_call.1} parent=1 // pred_check_branch
      %143 = sbr.rel (0) target = $region29
    $region28: #{tpu_custom_call.1} parent=1 // pred_region
      _
    $region29: #{tpu_custom_call.1} parent=1 // pred_fallthru
      _
    %144 = vsyncpa [#allocation3], 1
    %145 = vsyncpa [#allocation5], 1

</llo_original>
